<compile_context>
chip_gen: v7x
topology: tpu7x:2x2x1
jax: 0.10.0
libtpu: 0.0.40
codegen_flags: <defaults>
</compile_context>

<pallas_src>
import functools

import jax
import jax.numpy as jnp
from jax import lax
from jax.experimental import pallas as pl
from jax.experimental.pallas import tpu as pltpu


def _round_up(x, m):
    return ((x + m - 1) // m) * m


def _tensorcores_per_device():
    """Best-effort TensorCore count per device (2 on v7x-class chips)."""
    try:
        kind = jax.devices()[0].device_kind.lower()
        if "v7" in kind:
            return 2
    except Exception:
        pass
    return 1


def critic_kernel(s_ref, a_ref, w1s_ref, w1a_ref, b1_ref,
                  w2_ref, b2_ref, w3_ref, b3_ref, q_ref):
    # s_ref : (TB, in_dim) f32        a_ref : (TB, n_act) f32
    # w1s   : (fc1, in_dim) f32       w1a   : (fc1, n_act) f32   b1: (fc1, 1) f32
    # w2    : (fc2, fc1)    bf16      b2    : (fc2, 1) f32
    # w3    : (1, fc2)      bf16      b3    : (1, 1)   f32
    # q_ref : (1, TB)       f32       (batch on the lane axis -> dense stores)
    cdt = w2_ref.dtype                       # MXU operand dtype for fc2/q1 (bf16)

    # fc1 in the flipped (feature-on-sublane, batch-on-lane) layout.
    # Contracting the last dim of both operands absorbs the batch-major ->
    # feature-major transpose of the input tiles into the matmul; the split
    # (state / action) weights replace torch.cat([state, action], dim=1).
    dn = (((1,), (1,)), ((), ()))            # (fc1, K) . (TB, K) -> (fc1, TB)
    h1 = (lax.dot_general(w1s_ref[...], s_ref[...], dn,
                          preferred_element_type=jnp.float32)
          + lax.dot_general(w1a_ref[...], a_ref[...], dn,
                            preferred_element_type=jnp.float32)
          + b1_ref[...])
    h1 = jnp.maximum(h1, 0.0)                # (fc1, TB) f32, lane-dense

    # fc2: (fc2, fc1) @ (fc1, TB) -> (fc2, TB); plain MXU orientation.
    h2 = jnp.dot(w2_ref[...], h1.astype(cdt),
                 preferred_element_type=jnp.float32) + b2_ref[...]
    h2 = jnp.maximum(h2, 0.0)                # (fc2, TB) f32, lane-dense

    # q1: (1, fc2) @ (fc2, TB) -> lane-dense (1, TB) row; full-width stores.
    q = jnp.dot(w3_ref[...], h2.astype(cdt),
                preferred_element_type=jnp.float32) + b3_ref[...]
    q_ref[...] = q.astype(q_ref.dtype)


@functools.partial(jax.jit, static_argnames=("tile_b",))
def critic_forward(state, action, params, *, tile_b=1024):
    """state: (B, input_dims), action: (B, n_actions) -> q: (B, 1) float32."""
    w1s, w1a, b1, w2, b2, w3, b3 = params
    B, in_dim = state.shape
    n_act = action.shape[1]
    fc1 = w1s.shape[0]
    fc2 = w2.shape[0]

    # Grid sized for per-step overhead: one step per TensorCore for typical
    # TD3 batches, capped at `tile_b` for very large eval batches.
    n_tc = _tensorcores_per_device()
    b128 = _round_up(B, 128)
    per_core = _round_up(pl.cdiv(b128, n_tc), 128)
    tb = max(128, min(_round_up(tile_b, 128), per_core))
    b_pad = _round_up(B, tb)
    if b_pad != B:
        state = jnp.pad(state, ((0, b_pad - B), (0, 0)))
        action = jnp.pad(action, ((0, b_pad - B), (0, 0)))
    grid = (b_pad // tb,)

    # Weights/biases: full-array blocks with constant index_maps -> DMA'd once
    # and resident in VMEM across all batch tiles (~KB scale).
    resident = lambda shape: pl.BlockSpec(shape, lambda i: (0,) * len(shape))

    flops = 2 * b_pad * (in_dim * fc1 + n_act * fc1 + fc1 * fc2 + fc2)
    bytes_accessed = (
        state.size * state.dtype.itemsize
        + action.size * action.dtype.itemsize
        + sum(p.size * p.dtype.itemsize for p in params)
        + b_pad * 4)
    cost = pl.CostEstimate(flops=flops, transcendentals=0,
                           bytes_accessed=bytes_accessed)

    q_row = pl.pallas_call(
        critic_kernel,
        out_shape=jax.ShapeDtypeStruct((1, b_pad), jnp.float32),
        grid=grid,
        in_specs=[
            pl.BlockSpec((tb, in_dim), lambda i: (i, 0)),   # state tile
            pl.BlockSpec((tb, n_act), lambda i: (i, 0)),    # action tile
            resident(w1s.shape), resident(w1a.shape), resident(b1.shape),
            resident(w2.shape), resident(b2.shape),
            resident(w3.shape), resident(b3.shape),
        ],
        out_specs=pl.BlockSpec((1, tb), lambda i: (0, i)),  # lane-dense output
        compiler_params=pltpu.CompilerParams(
            dimension_semantics=("parallel",)),             # 2 TCs split tiles
        cost_estimate=cost,
    )(state, action, w1s, w1a, b1, w2, b2, w3, b3)

    return q_row[0, :B].reshape(B, 1)


def init_params(key, input_dims, n_actions, fc1_dims, fc2_dims,
                compute_dtype=jnp.bfloat16):
    """Mimics PyTorch nn.Linear default init U(-1/sqrt(fan_in), 1/sqrt(fan_in)).

    Weights are stored torch-native (out_features, in_features); biases as
    (out_features, 1) columns for the batch-on-lanes layout.  fc1's weight is
    pre-split into state/action halves (removes torch.cat) and kept float32
    (tiny, and it lets the kernel consume f32 state/action tiles with no
    casts); fc2 / q1 weights are bf16 for the fast MXU path.
    """
    def linear(key, fan_in, fan_out):
        kw, kb = jax.random.split(key)
        bound = 1.0 / (fan_in ** 0.5)
        w = jax.random.uniform(kw, (fan_out, fan_in), jnp.float32, -bound, bound)
        b = jax.random.uniform(kb, (fan_out, 1), jnp.float32, -bound, bound)
        return w, b

    k1, k2, k3 = jax.random.split(key, 3)
    w1, b1 = linear(k1, input_dims + n_actions, fc1_dims)   # (fc1, in+act)
    w2, b2 = linear(k2, fc1_dims, fc2_dims)                 # (fc2, fc1)
    w3, b3 = linear(k3, fc2_dims, 1)                        # (1, fc2)

    w1s = w1[:, :input_dims]
    w1a = w1[:, input_dims:]
    return (w1s, w1a, b1,
            w2.astype(compute_dtype), b2,
            w3.astype(compute_dtype), b3)


def critic_reference(state, action, params):
    """Plain-JAX reference mirroring the kernel's mixed-precision recipe."""
    w1s, w1a, b1, w2, b2, w3, b3 = params
    cdt = w2.dtype
    f32 = jnp.float32
    hi = lax.Precision.HIGHEST
    h1 = jnp.maximum(
        jnp.dot(state, w1s.T, precision=hi)
        + jnp.dot(action, w1a.T, precision=hi) + b1.T, 0.0)
    h2 = jnp.maximum(
        jnp.dot(h1.astype(cdt), w2.T, preferred_element_type=f32) + b2.T, 0.0)
    return jnp.dot(h2.astype(cdt), w3.T, preferred_element_type=f32) + b3.T


def critic_reference_f32(state, action, params):
    """Full-float32 reference of the original PyTorch forward (sanity check)."""
    w1s, w1a, b1, w2, b2, w3, b3 = params
    hi = lax.Precision.HIGHEST
    w1 = jnp.concatenate([w1s, w1a], axis=1)
    x = jnp.concatenate([state, action], axis=1)
    h1 = jnp.maximum(jnp.dot(x, w1.T, precision=hi) + b1.T, 0.0)
    h2 = jnp.maximum(jnp.dot(h1, w2.astype(jnp.float32).T, precision=hi) + b2.T, 0.0)
    return jnp.dot(h2, w3.astype(jnp.float32).T, precision=hi) + b3.T


if __name__ == "__main__":
    # Small, module-consistent shapes (input_dims[0]=16, n_actions=4).
    batch = 8
    input_dims = 16
    n_actions = 4
    fc1_dims = 32
    fc2_dims = 32

    key = jax.random.PRNGKey(0)
    k_state, k_action, k_params = jax.random.split(key, 3)

    state = jax.random.normal(k_state, (batch, input_dims), jnp.float32)
    action = jax.random.normal(k_action, (batch, n_actions), jnp.float32)
    params = init_params(k_params, input_dims, n_actions, fc1_dims, fc2_dims)

    q = critic_forward(state, action, params)
    jax.block_until_ready(q)
    assert q.shape == (batch, 1)

    # Same mixed-precision recipe (f32 fc1, bf16-operand fc2/q1, f32 acc).
    q_ref = critic_reference(state, action, params)
    assert jnp.allclose(q, q_ref, atol=1e-2, rtol=1e-2), "mismatch vs mixed-precision reference"

    # Loose sanity check against the pure-f32 PyTorch-equivalent math.
    q_f32 = critic_reference_f32(state, action, params)
    assert jnp.allclose(q, q_f32, atol=5e-2, rtol=5e-2), "mismatch vs f32 reference"

    print("KERNEL_OK")
</pallas_src>

<mosaic_0001>
module attributes {stable_mosaic.version = 11 : i64} {
  func.func @critic_kernel(%arg0: i32, %arg1: memref<128x16xf32, #tpu.memory_space<vmem>>, %arg2: memref<128x4xf32, #tpu.memory_space<vmem>>, %arg3: memref<32x16xf32, #tpu.memory_space<vmem>>, %arg4: memref<32x4xf32, #tpu.memory_space<vmem>>, %arg5: memref<32x1xf32, #tpu.memory_space<vmem>>, %arg6: memref<32x32xbf16, #tpu.memory_space<vmem>>, %arg7: memref<32x1xf32, #tpu.memory_space<vmem>>, %arg8: memref<1x32xbf16, #tpu.memory_space<vmem>>, %arg9: memref<1x1xf32, #tpu.memory_space<vmem>>, %arg10: memref<1x128xf32, #tpu.memory_space<vmem>>) attributes {dimension_semantics = [#tpu.dimension_semantics<parallel>], iteration_bounds = array<i64: 1>, scalar_prefetch = 0 : i64, scratch_operands = 0 : i64, tpu.core_type = #tpu.core_type<tc>, window_params = [{transform_indices = @transform_0, window_bounds = array<i64: 128, 16>}, {transform_indices = @transform_1, window_bounds = array<i64: 128, 4>}, {pipeline_mode = #tpu.pipeline_mode<synchronous>, transform_indices = @transform_2, window_bounds = array<i64: 32, 16>}, {pipeline_mode = #tpu.pipeline_mode<synchronous>, transform_indices = @transform_3, window_bounds = array<i64: 32, 4>}, {pipeline_mode = #tpu.pipeline_mode<synchronous>, transform_indices = @transform_4, window_bounds = array<i64: 32, 1>}, {pipeline_mode = #tpu.pipeline_mode<synchronous>, transform_indices = @transform_5, window_bounds = array<i64: 32, 32>}, {pipeline_mode = #tpu.pipeline_mode<synchronous>, transform_indices = @transform_6, window_bounds = array<i64: 32, 1>}, {pipeline_mode = #tpu.pipeline_mode<synchronous>, transform_indices = @transform_7, window_bounds = array<i64: 1, 32>}, {pipeline_mode = #tpu.pipeline_mode<synchronous>, transform_indices = @transform_8, window_bounds = array<i64: 1, 1>}, {transform_indices = @transform_9, window_bounds = array<i64: 1, 128>}]} {
    %c0 = arith.constant 0 : index
    %c0_0 = arith.constant 0 : index
    %0 = vector.load %arg3[%c0, %c0_0] : memref<32x16xf32, #tpu.memory_space<vmem>>, vector<32x16xf32>
    %c0_1 = arith.constant 0 : index
    %c0_2 = arith.constant 0 : index
    %1 = vector.load %arg1[%c0_1, %c0_2] : memref<128x16xf32, #tpu.memory_space<vmem>>, vector<128x16xf32>
    %cst = arith.constant dense<0.000000e+00> : vector<32x128xf32>
    %2 = tpu.matmul %0, %1, %cst {dimension_numbers = #tpu.dot_dimension_numbers<[1], [1], [0], [0], [0, 0, 1, 0], [], []>} : vector<32x16xf32>, vector<128x16xf32>, vector<32x128xf32> -> vector<32x128xf32>
    %c0_3 = arith.constant 0 : index
    %c0_4 = arith.constant 0 : index
    %3 = vector.load %arg4[%c0_3, %c0_4] : memref<32x4xf32, #tpu.memory_space<vmem>>, vector<32x4xf32>
    %c0_5 = arith.constant 0 : index
    %c0_6 = arith.constant 0 : index
    %4 = vector.load %arg2[%c0_5, %c0_6] : memref<128x4xf32, #tpu.memory_space<vmem>>, vector<128x4xf32>
    %cst_7 = arith.constant dense<0.000000e+00> : vector<32x128xf32>
    %5 = tpu.matmul %3, %4, %cst_7 {dimension_numbers = #tpu.dot_dimension_numbers<[1], [1], [0], [0], [0, 0, 1, 0], [], []>} : vector<32x4xf32>, vector<128x4xf32>, vector<32x128xf32> -> vector<32x128xf32>
    %6 = arith.addf %2, %5 : vector<32x128xf32>
    %c0_8 = arith.constant 0 : index
    %c0_9 = arith.constant 0 : index
    %7 = vector.load %arg5[%c0_8, %c0_9] : memref<32x1xf32, #tpu.memory_space<vmem>>, vector<32x1xf32>
    %8 = vector.broadcast %7 : vector<32x1xf32> to vector<32x128xf32>
    %9 = arith.addf %6, %8 : vector<32x128xf32>
    %cst_10 = arith.constant 0.000000e+00 : f32
    %10 = vector.broadcast %cst_10 : f32 to vector<32x128xf32>
    %11 = arith.maximumf %9, %10 : vector<32x128xf32>
    %c0_11 = arith.constant 0 : index
    %c0_12 = arith.constant 0 : index
    %12 = vector.load %arg6[%c0_11, %c0_12] : memref<32x32xbf16, #tpu.memory_space<vmem>>, vector<32x32xbf16>
    %13 = arith.truncf %11 : vector<32x128xf32> to vector<32x128xbf16>
    %cst_13 = arith.constant dense<0.000000e+00> : vector<32x128xf32>
    %14 = tpu.matmul %12, %13, %cst_13 {dimension_numbers = #tpu.dot_dimension_numbers<[1], [0], [0], [1], [0, 0, 1, 1], [], []>} : vector<32x32xbf16>, vector<32x128xbf16>, vector<32x128xf32> -> vector<32x128xf32>
    %c0_14 = arith.constant 0 : index
    %c0_15 = arith.constant 0 : index
    %15 = vector.load %arg7[%c0_14, %c0_15] : memref<32x1xf32, #tpu.memory_space<vmem>>, vector<32x1xf32>
    %16 = vector.broadcast %15 : vector<32x1xf32> to vector<32x128xf32>
    %17 = arith.addf %14, %16 : vector<32x128xf32>
    %cst_16 = arith.constant 0.000000e+00 : f32
    %18 = vector.broadcast %cst_16 : f32 to vector<32x128xf32>
    %19 = arith.maximumf %17, %18 : vector<32x128xf32>
    %c0_17 = arith.constant 0 : index
    %c0_18 = arith.constant 0 : index
    %20 = vector.load %arg8[%c0_17, %c0_18] : memref<1x32xbf16, #tpu.memory_space<vmem>>, vector<1x32xbf16>
    %21 = arith.truncf %19 : vector<32x128xf32> to vector<32x128xbf16>
    %cst_19 = arith.constant dense<0.000000e+00> : vector<1x128xf32>
    %22 = tpu.matmul %20, %21, %cst_19 {dimension_numbers = #tpu.dot_dimension_numbers<[1], [0], [0], [1], [0, 0, 1, 1], [], []>} : vector<1x32xbf16>, vector<32x128xbf16>, vector<1x128xf32> -> vector<1x128xf32>
    %c0_20 = arith.constant 0 : index
    %c0_21 = arith.constant 0 : index
    %23 = vector.load %arg9[%c0_20, %c0_21] : memref<1x1xf32, #tpu.memory_space<vmem>>, vector<1x1xf32>
    %24 = vector.broadcast %23 : vector<1x1xf32> to vector<1x128xf32>
    %25 = arith.addf %22, %24 : vector<1x128xf32>
    %c0_22 = arith.constant 0 : index
    %c0_23 = arith.constant 0 : index
    %26 = vector.load %arg10[%c0_22, %c0_23] : memref<1x128xf32, #tpu.memory_space<vmem>>, vector<1x128xf32>
    tpu.vector_store %arg10[%c0_22, %c0_23], %25 {strides = array<i32>} : memref<1x128xf32, #tpu.memory_space<vmem>>, vector<1x128xf32>,
    return
  }
  func.func @transform_0(%arg0: i32) -> (i32, i32) {
    %c0_i32 = arith.constant 0 : i32
    %c0_i32_0 = arith.constant 0 : i32
    return %arg0, %c0_i32 : i32, i32
  }
  func.func @transform_1(%arg0: i32) -> (i32, i32) {
    %c0_i32 = arith.constant 0 : i32
    %c0_i32_0 = arith.constant 0 : i32
    return %arg0, %c0_i32 : i32, i32
  }
  func.func @transform_2(%arg0: i32) -> (i32, i32) {
    %c0_i32 = arith.constant 0 : i32
    %c0_i32_0 = arith.constant 0 : i32
    %c0_i32_1 = arith.constant 0 : i32
    return %c0_i32, %c0_i32_0 : i32, i32
  }
  func.func @transform_3(%arg0: i32) -> (i32, i32) {
    %c0_i32 = arith.constant 0 : i32
    %c0_i32_0 = arith.constant 0 : i32
    %c0_i32_1 = arith.constant 0 : i32
    return %c0_i32, %c0_i32_0 : i32, i32
  }
  func.func @transform_4(%arg0: i32) -> (i32, i32) {
    %c0_i32 = arith.constant 0 : i32
    %c0_i32_0 = arith.constant 0 : i32
    %c0_i32_1 = arith.constant 0 : i32
    return %c0_i32, %c0_i32_0 : i32, i32
  }
  func.func @transform_5(%arg0: i32) -> (i32, i32) {
    %c0_i32 = arith.constant 0 : i32
    %c0_i32_0 = arith.constant 0 : i32
    %c0_i32_1 = arith.constant 0 : i32
    return %c0_i32, %c0_i32_0 : i32, i32
  }
  func.func @transform_6(%arg0: i32) -> (i32, i32) {
    %c0_i32 = arith.constant 0 : i32
    %c0_i32_0 = arith.constant 0 : i32
    %c0_i32_1 = arith.constant 0 : i32
    return %c0_i32, %c0_i32_0 : i32, i32
  }
  func.func @transform_7(%arg0: i32) -> (i32, i32) {
    %c0_i32 = arith.constant 0 : i32
    %c0_i32_0 = arith.constant 0 : i32
    %c0_i32_1 = arith.constant 0 : i32
    return %c0_i32, %c0_i32_0 : i32, i32
  }
  func.func @transform_8(%arg0: i32) -> (i32, i32) {
    %c0_i32 = arith.constant 0 : i32
    %c0_i32_0 = arith.constant 0 : i32
    %c0_i32_1 = arith.constant 0 : i32
    return %c0_i32, %c0_i32_0 : i32, i32
  }
  func.func @transform_9(%arg0: i32) -> (i32, i32) {
    %c0_i32 = arith.constant 0 : i32
    %c0_i32_0 = arith.constant 0 : i32
    return %c0_i32, %arg0 : i32, i32
  }
}

</mosaic_0001>

<llo_original>
// kernel: critic_forward.1
$region0: #{critic_forward.1}
  #allocation0 [shape = 'u32[]', space=smem, size = 0x4, offset = 0x4, fixed_abs, tag = 'smem constant byte address 0x4 - core index']
  #allocation1 [shape = 'u32[144,128]{1,0:T(1,128)}', space=vmem, size = 0x12000, scoped, tag = 'internal scratch']
  #allocation2 [shape = 'f32[1,1]{1,0:T(1,128)S(1)}', space=vmem, size = 0x200, scoped, tag = 'scoped memory for critic_forward.1']
  %s0 = inlined_call_operand.vmem [shape: f32[128,16], index: 0, kind: input, shape index: {}]
  %s1 = inlined_call_operand.vmem [shape: f32[128,4], index: 1, kind: input, shape index: {}]
  %s2 = inlined_call_operand.vmem [shape: f32[32,16], index: 2, kind: input, shape index: {}]
  %s3 = inlined_call_operand.vmem [shape: f32[32,4], index: 3, kind: input, shape index: {}]
  %s4 = inlined_call_operand.vmem [shape: f32[32,1], index: 4, kind: input, shape index: {}]
  %s5 = inlined_call_operand.vmem [shape: bf16[32,32], index: 5, kind: input, shape index: {}]
  %s6 = inlined_call_operand.vmem [shape: f32[32,1], index: 6, kind: input, shape index: {}]
  %s7 = inlined_call_operand.vmem [shape: bf16[1,32], index: 7, kind: input, shape index: {}]
  %s8 = inlined_call_operand.<no memory space> [shape: f32[1,1], index: 8, kind: input, shape index: {}]
  %s9 = inlined_call_operand.vmem [shape: f32[1,128], index: 9, kind: output, shape index: {}]
  %s10 = sld [smem:[#allocation0]]
  $region46: #{critic_forward.1} parent=0
    _
  %s12 = ssub.s32 1, %s10
  %s13 = scalar_select 0, %s12, %s10
  %v14 = vstv %s8
  %15 = vst [vmem:[#allocation2] sm:$0x1] %v14
  // Predicated region
  $region2: #{critic_forward.1} parent=0 // pred_check
    _
  $region3: #{critic_forward.1} parent=0 // pred_check_branch
    %17 = sbr.rel (0) target = $region5
  $region4: #{critic_forward.1} parent=0 // pred_region
    _
  $region5: #{critic_forward.1} parent=0 // pred_fallthru
    _
  // Predicated region
  $region6: #{critic_forward.1} parent=0 // pred_check
    _
  $region7: #{critic_forward.1} parent=0 // pred_check_branch
    %19 = sbr.rel (0) target = $region9
  $region8: #{critic_forward.1} parent=0 // pred_region
    _
  $region9: #{critic_forward.1} parent=0 // pred_fallthru
    _
  // Predicated region
  $region10: #{critic_forward.1} parent=0 // pred_check
    _
  $region11: #{critic_forward.1} parent=0 // pred_check_branch
    %21 = sbr.rel (0) target = $region13
  $region12: #{critic_forward.1} parent=0 // pred_region
    _
  $region13: #{critic_forward.1} parent=0 // pred_fallthru
    _
  // Predicated region
  $region14: #{critic_forward.1} parent=0 // pred_check
    _
  $region15: #{critic_forward.1} parent=0 // pred_check_branch
    %23 = sbr.rel (0) target = $region17
  $region16: #{critic_forward.1} parent=0 // pred_region
    _
  $region17: #{critic_forward.1} parent=0 // pred_fallthru
    _
  // Predicated region
  $region18: #{critic_forward.1} parent=0 // pred_check
    _
  $region19: #{critic_forward.1} parent=0 // pred_check_branch
    %25 = sbr.rel (0) target = $region21
  $region20: #{critic_forward.1} parent=0 // pred_region
    _
  $region21: #{critic_forward.1} parent=0 // pred_fallthru
    _
  // Predicated region
  $region22: #{critic_forward.1} parent=0 // pred_check
    _
  $region23: #{critic_forward.1} parent=0 // pred_check_branch
    %27 = sbr.rel (0) target = $region25
  $region24: #{critic_forward.1} parent=0 // pred_region
    _
  $region25: #{critic_forward.1} parent=0 // pred_fallthru
    _
  // Predicated region
  $region26: #{critic_forward.1} parent=0 // pred_check
    _
  $region27: #{critic_forward.1} parent=0 // pred_check_branch
    %29 = sbr.rel (0) target = $region29
  $region28: #{critic_forward.1} parent=0 // pred_region
    _
  $region29: #{critic_forward.1} parent=0 // pred_fallthru
    _
  // Predicated region
  $region30: #{critic_forward.1} parent=0 // pred_check
    _
  $region31: #{critic_forward.1} parent=0 // pred_check_branch
    %31 = sbr.rel (0) target = $region33
  $region32: #{critic_forward.1} parent=0 // pred_region
    _
  $region33: #{critic_forward.1} parent=0 // pred_fallthru
    _
  // Predicated region
  $region34: #{critic_forward.1} parent=0 // pred_check
    _
  $region35: #{critic_forward.1} parent=0 // pred_check_branch
    %33 = sbr.rel (0) target = $region37
  $region36: #{critic_forward.1} parent=0 // pred_region
    _
  $region37: #{critic_forward.1} parent=0 // pred_fallthru
    _
  %v35 = vld [vmem:[%s2] sm:$0xff]
  %v36 = vld [vmem:[%s2 + $0x8] sm:$0xff]
  %v37 = vld [vmem:[%s2 + $0x10] sm:$0xff]
  %v38 = vld [vmem:[%s2 + $0x18] sm:$0xff]
  %v39 = vld [vmem:[%s0] sm:$0xff]
  %v40 = vld [vmem:[%s0 + $0x8] sm:$0xff]
  %v41 = vld [vmem:[%s0 + $0x10] sm:$0xff]
  %v42 = vld [vmem:[%s0 + $0x18] sm:$0xff]
  %v43 = vld [vmem:[%s0 + $0x20] sm:$0xff]
  %v44 = vld [vmem:[%s0 + $0x28] sm:$0xff]
  %v45 = vld [vmem:[%s0 + $0x30] sm:$0xff]
  %v46 = vld [vmem:[%s0 + $0x38] sm:$0xff]
  %v47 = vld [vmem:[%s0 + $0x40] sm:$0xff]
  %v48 = vld [vmem:[%s0 + $0x48] sm:$0xff]
  %v49 = vld [vmem:[%s0 + $0x50] sm:$0xff]
  %v50 = vld [vmem:[%s0 + $0x58] sm:$0xff]
  %v51 = vld [vmem:[%s0 + $0x60] sm:$0xff]
  %v52 = vld [vmem:[%s0 + $0x68] sm:$0xff]
  %v53 = vld [vmem:[%s0 + $0x70] sm:$0xff]
  %v54 = vld [vmem:[%s0 + $0x78] sm:$0xff]
  %v55 = vld [vmem:[%s3] sm:$0xff]
  %v56 = vld [vmem:[%s3 + $0x8] sm:$0xff]
  %v57 = vld [vmem:[%s3 + $0x10] sm:$0xff]
  %v58 = vld [vmem:[%s3 + $0x18] sm:$0xff]
  %v59 = vld [vmem:[%s1] sm:$0xff]
  %v60 = vld [vmem:[%s1 + $0x8] sm:$0xff]
  %v61 = vld [vmem:[%s1 + $0x10] sm:$0xff]
  %v62 = vld [vmem:[%s1 + $0x18] sm:$0xff]
  %v63 = vld [vmem:[%s1 + $0x20] sm:$0xff]
  %v64 = vld [vmem:[%s1 + $0x28] sm:$0xff]
  %v65 = vld [vmem:[%s1 + $0x30] sm:$0xff]
  %v66 = vld [vmem:[%s1 + $0x38] sm:$0xff]
  %v67 = vld [vmem:[%s1 + $0x40] sm:$0xff]
  %v68 = vld [vmem:[%s1 + $0x48] sm:$0xff]
  %v69 = vld [vmem:[%s1 + $0x50] sm:$0xff]
  %v70 = vld [vmem:[%s1 + $0x58] sm:$0xff]
  %v71 = vld [vmem:[%s1 + $0x60] sm:$0xff]
  %v72 = vld [vmem:[%s1 + $0x68] sm:$0xff]
  %v73 = vld [vmem:[%s1 + $0x70] sm:$0xff]
  %v74 = vld [vmem:[%s1 + $0x78] sm:$0xff]
  %vm75 = vcmask 31744
  %v77 = vsel %vm75, %v55, 0
  %v80 = vsel %vm75, %v56, 0
  %v83 = vsel %vm75, %v57, 0
  %v86 = vsel %vm75, %v58, 0
  %v89 = vsel %vm75, %v59, 0
  %v92 = vsel %vm75, %v60, 0
  %v95 = vsel %vm75, %v61, 0
  %v98 = vsel %vm75, %v62, 0
  %v101 = vsel %vm75, %v63, 0
  %v104 = vsel %vm75, %v64, 0
  %v107 = vsel %vm75, %v65, 0
  %v110 = vsel %vm75, %v66, 0
  %v113 = vsel %vm75, %v67, 0
  %v116 = vsel %vm75, %v68, 0
  %v119 = vsel %vm75, %v69, 0
  %v122 = vsel %vm75, %v70, 0
  %v125 = vsel %vm75, %v71, 0
  %v128 = vsel %vm75, %v72, 0
  %v131 = vsel %vm75, %v73, 0
  %v134 = vsel %vm75, %v74, 0
  %136 = vmatprep.subr.mxu0 0.0
  %137 = vmatpush1.xpose.msra.mxu0 %v89
  %138 = vmatprep.subr.mxu0 0.0
  %139 = vmatpush1.xpose.msra.mxu0 %v92
  %140 = vmatprep.subr.mxu0 0.0
  %141 = vmatpush1.xpose.msra.mxu0 %v95
  %142 = vmatprep.subr.mxu0 0.0
  %143 = vmatpush1.xpose.msra.mxu0 %v98
  %144 = vmatprep.subr.mxu0 0.0
  %145 = vmatpush1.xpose.msra.mxu0 %v101
  %146 = vmatprep.subr.mxu0 0.0
  %147 = vmatpush1.xpose.msra.mxu0 %v104
  %148 = vmatprep.subr.mxu0 0.0
  %149 = vmatpush1.xpose.msra.mxu0 %v107
  %150 = vmatprep.subr.mxu0 0.0
  %151 = vmatpush1.xpose.msra.mxu0 %v110
  %152 = vmatprep.subr.mxu0 0.0
  %153 = vmatpush1.xpose.msra.mxu0 %v113
  %154 = vmatprep.subr.mxu0 0.0
  %155 = vmatpush1.xpose.msra.mxu0 %v116
  %156 = vmatprep.subr.mxu0 0.0
  %157 = vmatpush1.xpose.msra.mxu0 %v119
  %158 = vmatprep.subr.mxu0 0.0
  %159 = vmatpush1.xpose.msra.mxu0 %v122
  %160 = vmatprep.subr.mxu0 0.0
  %161 = vmatpush1.xpose.msra.mxu0 %v125
  %162 = vmatprep.subr.mxu0 0.0
  %163 = vmatpush1.xpose.msra.mxu0 %v128
  %164 = vmatprep.subr.mxu0 0.0
  %165 = vmatpush1.xpose.msra.mxu0 %v131
  %166 = vmatprep.subr.mxu0 0.0
  %167 = vmatpush1.xpose.msra.mxu0 %v134
  %168 = vmatprep.subr.mxu0 0.0
  %169 = vmatpush1.xpose.msra.mxu0 0.0
  %170 = vmatprep.subr.mxu0 0.0
  %171 = vmatpush1.xpose.msra.mxu0 0.0
  %172 = vmatprep.subr.mxu0 0.0
  %173 = vmatpush1.xpose.msra.mxu0 0.0
  %174 = vmatprep.subr.mxu0 0.0
  %175 = vmatpush1.xpose.msra.mxu0 0.0
  %176 = vmatprep.subr.mxu0 0.0
  %177 = vmatpush1.xpose.msra.mxu0 0.0
  %178 = vmatprep.subr.mxu0 0.0
  %179 = vmatpush1.xpose.msra.mxu0 0.0
  %180 = vmatprep.subr.mxu0 0.0
  %181 = vmatpush1.xpose.msra.mxu0 0.0
  %182 = vmatprep.subr.mxu0 0.0
  %183 = vmatpush1.xpose.msra.mxu0 0.0
  %184 = vmatprep.subr.mxu0 0.0
  %185 = vmatpush1.xpose.msra.mxu0 0.0
  %186 = vmatprep.subr.mxu0 0.0
  %187 = vmatpush1.xpose.msra.mxu0 0.0
  %188 = vmatprep.subr.mxu0 0.0
  %189 = vmatpush1.xpose.msra.mxu0 0.0
  %190 = vmatprep.subr.mxu0 0.0
  %191 = vmatpush1.xpose.msra.mxu0 0.0
  %192 = vmatprep.subr.mxu0 0.0
  %193 = vmatpush1.xpose.msra.mxu0 0.0
  %194 = vmatprep.subr.mxu0 0.0
  %195 = vmatpush1.xpose.msra.mxu0 0.0
  %196 = vmatprep.subr.mxu0 0.0
  %197 = vmatpush1.xpose.msra.mxu0 0.0
  %198 = vmatprep.subr.mxu0 0.0
  %199 = vmatpush1.xpose.msra.mxu0 0.0
  %200 = vmatprep.mubr.f32.mxu0 0.0
  %201 = vmatmul.mubr.f32.gmra.mrb[0].mxu0 %v77
  %v202 = vpop.f32.mrb[0].mxu0
  %v203 = vadd.f32 0.0, %v202
  %v204 = vpop.f32.mrb[0].mxu0
  %205 = vmatprep.mubr.f32.mxu0 0.0
  %206 = vmatmul.mubr.f32.gmra.mrb[0].mxu0 %v80
  %v207 = vpop.f32.mrb[0].mxu0
  %v208 = vadd.f32 0.0, %v207
  %v209 = vpop.f32.mrb[0].mxu0
  %210 = vmatprep.mubr.f32.mxu0 0.0
  %211 = vmatmul.mubr.f32.gmra.mrb[0].mxu0 %v83
  %v212 = vpop.f32.mrb[0].mxu0
  %v213 = vadd.f32 0.0, %v212
  %v214 = vpop.f32.mrb[0].mxu0
  %215 = vmatprep.mubr.f32.mxu0 0.0
  %216 = vmatmul.mubr.f32.gmra.mrb[0].mxu0 %v86
  %v217 = vpop.f32.mrb[0].mxu0
  %v218 = vadd.f32 0.0, %v217
  %v219 = vpop.f32.mrb[0].mxu0
  %220 = vdwg.mxu0
  %vm221 = vcmask 130048
  %v223 = vsel %vm221, %v35, 0
  %v226 = vsel %vm221, %v36, 0
  %v229 = vsel %vm221, %v37, 0
  %v232 = vsel %vm221, %v38, 0
  %v235 = vsel %vm221, %v39, 0
  %v238 = vsel %vm221, %v40, 0
  %v241 = vsel %vm221, %v41, 0
  %v244 = vsel %vm221, %v42, 0
  %v247 = vsel %vm221, %v43, 0
  %v250 = vsel %vm221, %v44, 0
  %v253 = vsel %vm221, %v45, 0
  %v256 = vsel %vm221, %v46, 0
  %v259 = vsel %vm221, %v47, 0
  %v262 = vsel %vm221, %v48, 0
  %v265 = vsel %vm221, %v49, 0
  %v268 = vsel %vm221, %v50, 0
  %v271 = vsel %vm221, %v51, 0
  %v274 = vsel %vm221, %v52, 0
  %v277 = vsel %vm221, %v53, 0
  %v280 = vsel %vm221, %v54, 0
  %282 = vmatprep.subr.mxu0 0.0
  %283 = vmatpush1.xpose.msra.mxu0 %v235
  %284 = vmatprep.subr.mxu0 0.0
  %285 = vmatpush1.xpose.msra.mxu0 %v238
  %286 = vmatprep.subr.mxu0 0.0
  %287 = vmatpush1.xpose.msra.mxu0 %v241
  %288 = vmatprep.subr.mxu0 0.0
  %289 = vmatpush1.xpose.msra.mxu0 %v244
  %290 = vmatprep.subr.mxu0 0.0
  %291 = vmatpush1.xpose.msra.mxu0 %v247
  %292 = vmatprep.subr.mxu0 0.0
  %293 = vmatpush1.xpose.msra.mxu0 %v250
  %294 = vmatprep.subr.mxu0 0.0
  %295 = vmatpush1.xpose.msra.mxu0 %v253
  %296 = vmatprep.subr.mxu0 0.0
  %297 = vmatpush1.xpose.msra.mxu0 %v256
  %298 = vmatprep.subr.mxu0 0.0
  %299 = vmatpush1.xpose.msra.mxu0 %v259
  %300 = vmatprep.subr.mxu0 0.0
  %301 = vmatpush1.xpose.msra.mxu0 %v262
  %302 = vmatprep.subr.mxu0 0.0
  %303 = vmatpush1.xpose.msra.mxu0 %v265
  %304 = vmatprep.subr.mxu0 0.0
  %305 = vmatpush1.xpose.msra.mxu0 %v268
  %306 = vmatprep.subr.mxu0 0.0
  %307 = vmatpush1.xpose.msra.mxu0 %v271
  %308 = vmatprep.subr.mxu0 0.0
  %309 = vmatpush1.xpose.msra.mxu0 %v274
  %310 = vmatprep.subr.mxu0 0.0
  %311 = vmatpush1.xpose.msra.mxu0 %v277
  %312 = vmatprep.subr.mxu0 0.0
  %313 = vmatpush1.xpose.msra.mxu0 %v280
  %314 = vmatprep.subr.mxu0 0.0
  %315 = vmatpush1.xpose.msra.mxu0 0.0
  %316 = vmatprep.subr.mxu0 0.0
  %317 = vmatpush1.xpose.msra.mxu0 0.0
  %318 = vmatprep.subr.mxu0 0.0
  %319 = vmatpush1.xpose.msra.mxu0 0.0
  %320 = vmatprep.subr.mxu0 0.0
  %321 = vmatpush1.xpose.msra.mxu0 0.0
  %322 = vmatprep.subr.mxu0 0.0
  %323 = vmatpush1.xpose.msra.mxu0 0.0
  %324 = vmatprep.subr.mxu0 0.0
  %325 = vmatpush1.xpose.msra.mxu0 0.0
  %326 = vmatprep.subr.mxu0 0.0
  %327 = vmatpush1.xpose.msra.mxu0 0.0
  %328 = vmatprep.subr.mxu0 0.0
  %329 = vmatpush1.xpose.msra.mxu0 0.0
  %330 = vmatprep.subr.mxu0 0.0
  %331 = vmatpush1.xpose.msra.mxu0 0.0
  %332 = vmatprep.subr.mxu0 0.0
  %333 = vmatpush1.xpose.msra.mxu0 0.0
  %334 = vmatprep.subr.mxu0 0.0
  %335 = vmatpush1.xpose.msra.mxu0 0.0
  %336 = vmatprep.subr.mxu0 0.0
  %337 = vmatpush1.xpose.msra.mxu0 0.0
  %338 = vmatprep.subr.mxu0 0.0
  %339 = vmatpush1.xpose.msra.mxu0 0.0
  %340 = vmatprep.subr.mxu0 0.0
  %341 = vmatpush1.xpose.msra.mxu0 0.0
  %342 = vmatprep.subr.mxu0 0.0
  %343 = vmatpush1.xpose.msra.mxu0 0.0
  %344 = vmatprep.subr.mxu0 0.0
  %345 = vmatpush1.xpose.msra.mxu0 0.0
  %346 = vmatprep.mubr.f32.mxu0 0.0
  %347 = vmatmul.mubr.f32.gmra.mrb[0].mxu0 %v223
  %v348 = vpop.f32.mrb[0].mxu0
  %v349 = vadd.f32 %v203, %v348
  %v350 = vpop.f32.mrb[0].mxu0
  %351 = vmatprep.mubr.f32.mxu0 0.0
  %352 = vmatmul.mubr.f32.gmra.mrb[0].mxu0 %v226
  %v353 = vpop.f32.mrb[0].mxu0
  %v354 = vadd.f32 %v208, %v353
  %v355 = vpop.f32.mrb[0].mxu0
  %356 = vmatprep.mubr.f32.mxu0 0.0
  %357 = vmatmul.mubr.f32.gmra.mrb[0].mxu0 %v229
  %v358 = vpop.f32.mrb[0].mxu0
  %v359 = vadd.f32 %v213, %v358
  %v360 = vpop.f32.mrb[0].mxu0
  %361 = vmatprep.mubr.f32.mxu0 0.0
  %362 = vmatmul.mubr.f32.gmra.mrb[0].mxu0 %v232
  %v363 = vpop.f32.mrb[0].mxu0
  %v364 = vadd.f32 %v218, %v363
  %v365 = vpop.f32.mrb[0].mxu0
  %366 = vdwg.mxu0
  %v367 = vld [vmem:[%s4] sm:$0xff]
  %v368 = vld [vmem:[%s4 + $0x8] sm:$0xff]
  %v369 = vld [vmem:[%s4 + $0x10] sm:$0xff]
  %v370 = vld [vmem:[%s4 + $0x18] sm:$0xff]
  %372 = vset.pattern.permute.xlu0 0
  %373 = vperm.xlu0 %372, %v367
  %v374 = vpop.permute.xlu0 %373
  %377 = vset.pattern.permute.xlu0 0
  %378 = vperm.xlu0 %377, %v368
  %v379 = vpop.permute.xlu0 %378
  %382 = vset.pattern.permute.xlu0 0
  %383 = vperm.xlu0 %382, %v369
  %v384 = vpop.permute.xlu0 %383
  %387 = vset.pattern.permute.xlu0 0
  %388 = vperm.xlu0 %387, %v370
  %v389 = vpop.permute.xlu0 %388
  %v391 = vadd.f32 %v349, %v374
  %v392 = vadd.f32 %v354, %v379
  %v393 = vadd.f32 %v359, %v384
  %v394 = vadd.f32 %v364, %v389
  %v395 = vmax.f32 %v391, 0.0
  %v396 = vmax.f32 %v392, 0.0
  %v397 = vmax.f32 %v393, 0.0
  %v398 = vmax.f32 %v394, 0.0
  %v399 = vld [vmem:[%s5] sm:$0xf]
  %v400 = vld [vmem:[%s5 + $0x4] sm:$0xf]
  %v401 = vld [vmem:[%s5 + $0x8] sm:$0xf]
  %v402 = vld [vmem:[%s5 + $0xc] sm:$0xf]
  %v403 = vpack.c.bf16 %v396, %v395
  %v404 = vpack.c.bf16 %v398, %v397
  %v405 = vld [vmem:[%s6] sm:$0xff]
  %v406 = vld [vmem:[%s6 + $0x8] sm:$0xff]
  %v407 = vld [vmem:[%s6 + $0x10] sm:$0xff]
  %v408 = vld [vmem:[%s6 + $0x18] sm:$0xff]
  %410 = vset.pattern.permute.xlu0 0
  %411 = vperm.xlu0 %410, %v405
  %v412 = vpop.permute.xlu0 %411
  %415 = vset.pattern.permute.xlu0 0
  %416 = vperm.xlu0 %415, %v406
  %v417 = vpop.permute.xlu0 %416
  %420 = vset.pattern.permute.xlu0 0
  %421 = vperm.xlu0 %420, %v407
  %v422 = vpop.permute.xlu0 %421
  %425 = vset.pattern.permute.xlu0 0
  %426 = vperm.xlu0 %425, %v408
  %v427 = vpop.permute.xlu0 %426
  %v433 = vunpack.c.l.b16 %v399
  %v434 = vunpack.c.l.b16 %v400
  %v435 = vunpack.c.l.b16 %v401
  %v436 = vunpack.c.l.b16 %v402
  %v437 = vpack.c.b16 %v434, %v433
  %v438 = vpack.c.b16 %v436, %v435
  %vm439 = vcmask 261120
  %v441 = vsel %vm439, %v437, 0
  %v444 = vsel %vm439, %v438, 0
  %446 = vmatprep.subr.bf16.mxu0 0
  %447 = vmatpush1.bf16.msra.mxu0 %v403
  %448 = vmatprep.subr.bf16.mxu0 0
  %449 = vmatpush1.bf16.msra.mxu0 %v404
  %450 = vmatprep.subr.bf16.mxu0 0
  %451 = vmatpush1.bf16.msra.mxu0 0
  %452 = vmatprep.subr.bf16.mxu0 0
  %453 = vmatpush1.bf16.msra.mxu0 0
  %454 = vmatprep.subr.bf16.mxu0 0
  %455 = vmatpush1.bf16.msra.mxu0 0
  %456 = vmatprep.subr.bf16.mxu0 0
  %457 = vmatpush1.bf16.msra.mxu0 0
  %458 = vmatprep.subr.bf16.mxu0 0
  %459 = vmatpush1.bf16.msra.mxu0 0
  %460 = vmatprep.subr.bf16.mxu0 0
  %461 = vmatpush1.bf16.msra.mxu0 0
  %462 = vmatprep.subr.bf16.mxu0 0
  %463 = vmatpush1.bf16.msra.mxu0 0
  %464 = vmatprep.subr.bf16.mxu0 0
  %465 = vmatpush1.bf16.msra.mxu0 0
  %466 = vmatprep.subr.bf16.mxu0 0
  %467 = vmatpush1.bf16.msra.mxu0 0
  %468 = vmatprep.subr.bf16.mxu0 0
  %469 = vmatpush1.bf16.msra.mxu0 0
  %470 = vmatprep.subr.bf16.mxu0 0
  %471 = vmatpush1.bf16.msra.mxu0 0
  %472 = vmatprep.subr.bf16.mxu0 0
  %473 = vmatpush1.bf16.msra.mxu0 0
  %474 = vmatprep.subr.bf16.mxu0 0
  %475 = vmatpush1.bf16.msra.mxu0 0
  %476 = vmatprep.subr.bf16.mxu0 0
  %477 = vmatpush1.bf16.msra.mxu0 0
  %478 = vmatprep.mubr.bf16.mxu0 0
  %479 = vmatmul.mubr.bf16.gmra.mrb[0].mxu0 %v441
  %v480 = vpop.f32.mrb[0].mxu0
  %v481 = vadd.f32 %v412, %v480
  %v482 = vpop.f32.mrb[0].mxu0
  %v483 = vpop.f32.mrb[0].mxu0
  %v484 = vadd.f32 %v417, %v483
  %v485 = vpop.f32.mrb[0].mxu0
  %486 = vmatprep.mubr.bf16.mxu0 0
  %487 = vmatmul.mubr.bf16.gmra.mrb[0].mxu0 %v444
  %v488 = vpop.f32.mrb[0].mxu0
  %v489 = vadd.f32 %v422, %v488
  %v490 = vpop.f32.mrb[0].mxu0
  %v491 = vpop.f32.mrb[0].mxu0
  %v492 = vadd.f32 %v427, %v491
  %v493 = vpop.f32.mrb[0].mxu0
  %494 = vdwg.mxu0
  %v495 = vmax.f32 %v481, 0.0
  %v496 = vmax.f32 %v484, 0.0
  %v497 = vmax.f32 %v489, 0.0
  %v498 = vmax.f32 %v492, 0.0
  %v499 = vld [vmem:[%s7] sm:$0x1]
  %v500 = vpack.c.bf16 %v496, %v495
  %v501 = vpack.c.bf16 %v498, %v497
  %v502 = vld [vmem:[#allocation2] sm:$0x1]
  %504 = vset.pattern.permute.xlu0 0
  %505 = vperm.xlu0 %504, %v502
  %v506 = vpop.permute.xlu0 %505
  %v508 = vlaneseq
  %v509 = vshrl.u32 %v508, 7
  %v510 = vsub.s32 0, %v509
  %v511 = vrot.slane %v506, %v510
  %v513 = vsel %vm439, %v499, 0
  %515 = vmatprep.subr.bf16.mxu0 0
  %516 = vmatpush1.bf16.msra.mxu0 %v500
  %517 = vmatprep.subr.bf16.mxu0 0
  %518 = vmatpush1.bf16.msra.mxu0 %v501
  %519 = vmatprep.subr.bf16.mxu0 0
  %520 = vmatpush1.bf16.msra.mxu0 0
  %521 = vmatprep.subr.bf16.mxu0 0
  %522 = vmatpush1.bf16.msra.mxu0 0
  %523 = vmatprep.subr.bf16.mxu0 0
  %524 = vmatpush1.bf16.msra.mxu0 0
  %525 = vmatprep.subr.bf16.mxu0 0
  %526 = vmatpush1.bf16.msra.mxu0 0
  %527 = vmatprep.subr.bf16.mxu0 0
  %528 = vmatpush1.bf16.msra.mxu0 0
  %529 = vmatprep.subr.bf16.mxu0 0
  %530 = vmatpush1.bf16.msra.mxu0 0
  %531 = vmatprep.subr.bf16.mxu0 0
  %532 = vmatpush1.bf16.msra.mxu0 0
  %533 = vmatprep.subr.bf16.mxu0 0
  %534 = vmatpush1.bf16.msra.mxu0 0
  %535 = vmatprep.subr.bf16.mxu0 0
  %536 = vmatpush1.bf16.msra.mxu0 0
  %537 = vmatprep.subr.bf16.mxu0 0
  %538 = vmatpush1.bf16.msra.mxu0 0
  %539 = vmatprep.subr.bf16.mxu0 0
  %540 = vmatpush1.bf16.msra.mxu0 0
  %541 = vmatprep.subr.bf16.mxu0 0
  %542 = vmatpush1.bf16.msra.mxu0 0
  %543 = vmatprep.subr.bf16.mxu0 0
  %544 = vmatpush1.bf16.msra.mxu0 0
  %545 = vmatprep.subr.bf16.mxu0 0
  %546 = vmatpush1.bf16.msra.mxu0 0
  %547 = vmatprep.mubr.bf16.mxu0 0
  %548 = vmatmul.mubr.bf16.gmra.mrb[0].mxu0 %v513
  %v549 = vpop.f32.mrb[0].mxu0
  %v550 = vadd.f32 %v511, %v549
  %v551 = vpop.f32.mrb[0].mxu0
  %v552 = vpop.f32.mrb[0].mxu0
  %v553 = vpop.f32.mrb[0].mxu0
  %554 = vdwg.mxu0
  %555 = vst [vmem:[%s9] sm:$0x1] %v550
  // Predicated region
  $region38: #{critic_forward.1} parent=0 // pred_check
    _
  $region39: #{critic_forward.1} parent=0 // pred_check_branch
    %557 = sbr.rel (0) target = $region41
  $region40: #{critic_forward.1} parent=0 // pred_region
    _
  $region41: #{critic_forward.1} parent=0 // pred_fallthru
    _
  // Predicated region
  $region42: #{critic_forward.1} parent=0 // pred_check
    _
  $region43: #{critic_forward.1} parent=0 // pred_check_branch
    %559 = sbr.rel (0) target = $region45
  $region44: #{critic_forward.1} parent=0 // pred_region
    _
  $region45: #{critic_forward.1} parent=0 // pred_fallthru
    _

</llo_original>
